<compile_context>
chip_gen: v7x
topology: tpu7x:2x2x1
jax: 0.10.0
libtpu: 0.0.40
codegen_flags: <defaults>
</compile_context>

<pallas_src>
import functools

import jax
import jax.numpy as jnp
from jax.experimental import pallas as pl
from jax.experimental.pallas import tpu as pltpu


# --------------------------------------------------------------------------- #
# Shared per-tile max / first-index-argmax helper.
# --------------------------------------------------------------------------- #
def _tile_max_argmax(x, v_base, v_total):
    """x: (R, TV) float32.  Returns ((R,1) max, (R,1) int32 global argmax).

    First-index tie-breaking inside the tile; columns >= v_total are masked
    (only needed when the last V-tile is partial).
    """
    tv = x.shape[-1]
    col = jax.lax.broadcasted_iota(jnp.int32, x.shape, dimension=1)
    if v_total % tv != 0:
        valid = (v_base + col) < v_total
        x = jnp.where(valid, x, -jnp.inf)
        m = jnp.max(x, axis=-1, keepdims=True)
        cand = jnp.where(jnp.logical_and(x == m, valid), col, tv)
    else:
        m = jnp.max(x, axis=-1, keepdims=True)
        cand = jnp.where(x == m, col, tv)
    local = jnp.min(cand, axis=-1, keepdims=True)
    return m, (v_base + local).astype(jnp.int32)


def _combine_running(v_axis, m, gidx, run_max_ref, run_idx_ref):
    """Running (max, argmax) combine; ties keep the earlier (smaller) index."""
    v_idx = pl.program_id(v_axis)

    @pl.when(v_idx == 0)
    def _init():
        run_max_ref[...] = m
        run_idx_ref[...] = gidx

    @pl.when(v_idx > 0)
    def _combine():
        better = m > run_max_ref[...]
        run_idx_ref[...] = jnp.where(better, gidx, run_idx_ref[...])
        run_max_ref[...] = jnp.maximum(run_max_ref[...], m)


# --------------------------------------------------------------------------- #
# forward: (B, L, V) -> (B, L)
# --------------------------------------------------------------------------- #
def _argmax3d_kernel(v_total, x_ref, o_ref, run_max_ref, run_idx_ref):
    # x_ref block: (1, TL, TV); o_ref block: (1, TL, 1); scratch: (TL, 1).
    v_idx = pl.program_id(2)
    tv = x_ref.shape[-1]
    x = x_ref[0].astype(jnp.float32)                    # (TL, TV)
    m, gidx = _tile_max_argmax(x, v_idx * tv, v_total)
    _combine_running(2, m, gidx, run_max_ref, run_idx_ref)

    @pl.when(v_idx == pl.num_programs(2) - 1)
    def _finalize():
        o_ref[0] = run_idx_ref[...]                     # (TL, 1), layout-matched


def _vmem_limit_bytes(block_bytes):
    # 2x double-buffered input + tiny output/scratch, with headroom; capped so
    # the same tiling compiles on v7x (64 MiB physical VMEM).
    return int(min(32 * 1024 * 1024, max(8 * 1024 * 1024, 4 * block_bytes)))


def greedy_search_forward(logits: jax.Array) -> jax.Array:
    """Equivalent of GreedySearch.forward: argmax over axis 2 of (B, L, V)."""
    if logits.ndim != 3:
        raise ValueError(f"Logits need to be 3D, was: {logits.shape}")
    B, L, V = logits.shape
    tl = L if L <= 256 else 256          # multiple of 8 or full dim
    tv = V if V <= 1024 else 1024        # multiple of 128 or full dim
    block_bytes = tl * tv * logits.dtype.itemsize

    out3 = pl.pallas_call(
        functools.partial(_argmax3d_kernel, V),
        out_shape=jax.ShapeDtypeStruct((B, L, 1), jnp.int32),
        grid_spec=pltpu.PrefetchScalarGridSpec(
            num_scalar_prefetch=0,
            grid=(B, pl.cdiv(L, tl), pl.cdiv(V, tv)),
            in_specs=[pl.BlockSpec((1, tl, tv), lambda b, l, v: (b, l, v))],
            out_specs=pl.BlockSpec((1, tl, 1), lambda b, l, v: (b, l, 0)),
            scratch_shapes=[
                pltpu.VMEM((tl, 1), jnp.float32),   # running max
                pltpu.VMEM((tl, 1), jnp.int32),     # running argmax
            ],
        ),
        compiler_params=pltpu.CompilerParams(
            dimension_semantics=("parallel", "parallel", "arbitrary"),
            vmem_limit_bytes=_vmem_limit_bytes(block_bytes),
        ),
    )(logits)
    return out3[:, :, 0]


# --------------------------------------------------------------------------- #
# step: (B, V) -> (B, 1)   (batch packed into sublanes, single grid over V)
# --------------------------------------------------------------------------- #
def _argmax2d_kernel(v_total, x_ref, o_ref, run_max_ref, run_idx_ref):
    # x_ref block: (TB, TV); o_ref block: (TB, 1); scratch: (TB, 1).
    v_idx = pl.program_id(1)
    tv = x_ref.shape[-1]
    x = x_ref[...].astype(jnp.float32)                  # (TB, TV)
    m, gidx = _tile_max_argmax(x, v_idx * tv, v_total)
    _combine_running(1, m, gidx, run_max_ref, run_idx_ref)

    @pl.when(v_idx == pl.num_programs(1) - 1)
    def _finalize():
        o_ref[...] = run_idx_ref[...]


def greedy_search_step(logits: jax.Array) -> jax.Array:
    """Equivalent of GreedySearch.step: argmax over axis 1 of (B, V), keepdim."""
    if logits.ndim > 3:
        raise ValueError(f"Logits need to be 2D or 3D, was: {logits.shape}")
    if logits.ndim != 2:
        # TODO(synk): 3D step path (torch.argmax over axis 1 of (B, L, V)) not implemented.
        raise NotImplementedError("greedy_search_step only supports 2D (B, V) logits")
    B, V = logits.shape
    tb = B if B <= 256 else 256          # multiple of 8 or full dim
    tv = V if V <= 1024 else 1024
    block_bytes = tb * tv * logits.dtype.itemsize

    return pl.pallas_call(
        functools.partial(_argmax2d_kernel, V),
        out_shape=jax.ShapeDtypeStruct((B, 1), jnp.int32),
        grid_spec=pltpu.PrefetchScalarGridSpec(
            num_scalar_prefetch=0,
            grid=(pl.cdiv(B, tb), pl.cdiv(V, tv)),
            in_specs=[pl.BlockSpec((tb, tv), lambda b, v: (b, v))],
            out_specs=pl.BlockSpec((tb, 1), lambda b, v: (b, 0)),
            scratch_shapes=[
                pltpu.VMEM((tb, 1), jnp.float32),
                pltpu.VMEM((tb, 1), jnp.int32),
            ],
        ),
        compiler_params=pltpu.CompilerParams(
            dimension_semantics=("parallel", "arbitrary"),
            vmem_limit_bytes=_vmem_limit_bytes(block_bytes),
        ),
    )(logits)


# --------------------------------------------------------------------------- #
# Self-test
# --------------------------------------------------------------------------- #
if __name__ == "__main__":
    key = jax.random.PRNGKey(0)
    k1, k2, k3, k4, k5 = jax.random.split(key, 5)

    # 1) forward, small shape (single block path)
    B, L, V = 2, 8, 32
    logits = jax.random.normal(k1, (B, L, V), dtype=jnp.float32)
    ids = jax.block_until_ready(greedy_search_forward(logits))
    ref = jnp.argmax(logits, axis=2).astype(jnp.int32)
    assert ids.shape == (B, L)
    assert bool(jnp.all(ids == ref)), "forward (small) mismatch vs jnp.argmax"

    # 2) forward, tiled path: L-tiling (L=300 > 256) + V-tiling with a partial
    #    last vocab tile (2560 % 1024 != 0) -> exercises cross-tile combine & mask.
    B2, L2, V2 = 2, 300, 2560
    logits2 = jax.random.normal(k2, (B2, L2, V2), dtype=jnp.float32)
    ids2 = jax.block_until_ready(greedy_search_forward(logits2))
    ref2 = jnp.argmax(logits2, axis=2).astype(jnp.int32)
    assert ids2.shape == (B2, L2)
    assert bool(jnp.all(ids2 == ref2)), "forward (tiled) mismatch vs jnp.argmax"

    # 3) forward, bf16 logits stay bf16 through the DMA (upcast in-kernel)
    logits3 = jax.random.normal(k3, (B2, 16, V2), dtype=jnp.float32).astype(jnp.bfloat16)
    ids3 = jax.block_until_ready(greedy_search_forward(logits3))
    ref3 = jnp.argmax(logits3, axis=2).astype(jnp.int32)
    assert bool(jnp.all(ids3 == ref3)), "forward (bf16) mismatch vs jnp.argmax"

    # 4) step, small decode batch
    step_logits = jax.random.normal(k4, (B, V), dtype=jnp.float32)
    step_ids = jax.block_until_ready(greedy_search_step(step_logits))
    step_ref = jnp.argmax(step_logits, axis=1)[:, None].astype(jnp.int32)
    assert step_ids.shape == (B, 1)
    assert bool(jnp.all(step_ids == step_ref)), "step (small) mismatch vs jnp.argmax"

    # 5) step, larger vocab with V-tiling + partial last tile
    step_logits2 = jax.random.normal(k5, (4, V2), dtype=jnp.float32)
    step_ids2 = jax.block_until_ready(greedy_search_step(step_logits2))
    step_ref2 = jnp.argmax(step_logits2, axis=1)[:, None].astype(jnp.int32)
    assert bool(jnp.all(step_ids2 == step_ref2)), "step (tiled) mismatch vs jnp.argmax"

    print("KERNEL_OK")
</pallas_src>

<mosaic_0001>
module attributes {stable_mosaic.version = 11 : i64} {
  func.func @_argmax3d_kernel(%arg0: i32, %arg1: i32, %arg2: i32, %arg3: memref<1x8x32xf32, #tpu.memory_space<vmem>>, %arg4: memref<1x8x1xi32, #tpu.memory_space<vmem>>, %arg5: memref<8x1xf32, #tpu.memory_space<vmem>>, %arg6: memref<8x1xi32, #tpu.memory_space<vmem>>) attributes {dimension_semantics = [#tpu.dimension_semantics<parallel>, #tpu.dimension_semantics<parallel>, #tpu.dimension_semantics<arbitrary>], iteration_bounds = array<i64: 2, 1, 1>, scalar_prefetch = 0 : i64, scratch_operands = 2 : i64, tpu.core_type = #tpu.core_type<tc>, window_params = [{transform_indices = @transform_0, window_bounds = array<i64: 1, 8, 32>}, {transform_indices = @transform_1, window_bounds = array<i64: 1, 8, 1>}]} {
    %c0 = arith.constant 0 : index
    %c0_0 = arith.constant 0 : index
    %c0_1 = arith.constant 0 : index
    %0 = vector.load %arg3[%c0, %c0_0, %c0_1] : memref<1x8x32xf32, #tpu.memory_space<vmem>>, vector<1x8x32xf32>
    %1 = vector.shape_cast %0 : vector<1x8x32xf32> to vector<8x32xf32>
    %c32_i32 = arith.constant 32 : i32
    %2 = arith.muli %arg2, %c32_i32 : i32
    %3 = tpu.iota {dimensions = array<i32: 1>} : vector<8x32xi32>
    %cst = arith.constant dense<0xFF800000> : vector<8xf32>
    %4 = vector.multi_reduction <maximumf>, %1, %cst [1] : vector<8x32xf32> to vector<8xf32>
    %5 = vector.shape_cast %4 : vector<8xf32> to vector<8x1xf32>
    %6 = vector.broadcast %5 : vector<8x1xf32> to vector<8x32xf32>
    %7 = arith.cmpf oeq, %1, %6 : vector<8x32xf32>
    %c32_i32_2 = arith.constant 32 : i32
    %8 = vector.broadcast %c32_i32_2 : i32 to vector<8x32xi32>
    %9 = arith.select %7, %3, %8 : vector<8x32xi1>, vector<8x32xi32>
    %cst_3 = arith.constant dense<2147483647> : vector<8xi32>
    %10 = vector.multi_reduction <minsi>, %9, %cst_3 [1] : vector<8x32xi32> to vector<8xi32>
    %11 = vector.shape_cast %10 : vector<8xi32> to vector<8x1xi32>
    %12 = vector.broadcast %2 : i32 to vector<8x1xi32>
    %13 = arith.addi %12, %11 : vector<8x1xi32>
    %c0_i32 = arith.constant 0 : i32
    %14 = arith.cmpi eq, %arg2, %c0_i32 : i32
    %15 = arith.extui %14 : i1 to i32
    %c0_i32_4 = arith.constant 0 : i32
    %16 = arith.cmpi ne, %15, %c0_i32_4 : i32
    scf.if %16 {
      %c0_9 = arith.constant 0 : index
      %c0_10 = arith.constant 0 : index
      %23 = vector.load %arg5[%c0_9, %c0_10] : memref<8x1xf32, #tpu.memory_space<vmem>>, vector<8x1xf32>
      tpu.vector_store %arg5[%c0_9, %c0_10], %5 {strides = array<i32>} : memref<8x1xf32, #tpu.memory_space<vmem>>, vector<8x1xf32>,
      %c0_11 = arith.constant 0 : index
      %c0_12 = arith.constant 0 : index
      %24 = vector.load %arg6[%c0_11, %c0_12] : memref<8x1xi32, #tpu.memory_space<vmem>>, vector<8x1xi32>
      tpu.vector_store %arg6[%c0_11, %c0_12], %13 {strides = array<i32>} : memref<8x1xi32, #tpu.memory_space<vmem>>, vector<8x1xi32>,
    } else {
    }
    %c0_i32_5 = arith.constant 0 : i32
    %17 = arith.cmpi sgt, %arg2, %c0_i32_5 : i32
    %18 = arith.extui %17 : i1 to i32
    %c0_i32_6 = arith.constant 0 : i32
    %19 = arith.cmpi ne, %18, %c0_i32_6 : i32
    scf.if %19 {
      %c0_9 = arith.constant 0 : index
      %c0_10 = arith.constant 0 : index
      %23 = vector.load %arg5[%c0_9, %c0_10] : memref<8x1xf32, #tpu.memory_space<vmem>>, vector<8x1xf32>
      %24 = arith.cmpf ogt, %5, %23 : vector<8x1xf32>
      %c0_11 = arith.constant 0 : index
      %c0_12 = arith.constant 0 : index
      %25 = vector.load %arg6[%c0_11, %c0_12] : memref<8x1xi32, #tpu.memory_space<vmem>>, vector<8x1xi32>
      %26 = arith.select %24, %13, %25 : vector<8x1xi1>, vector<8x1xi32>
      %c0_13 = arith.constant 0 : index
      %c0_14 = arith.constant 0 : index
      %27 = vector.load %arg6[%c0_13, %c0_14] : memref<8x1xi32, #tpu.memory_space<vmem>>, vector<8x1xi32>
      tpu.vector_store %arg6[%c0_13, %c0_14], %26 {strides = array<i32>} : memref<8x1xi32, #tpu.memory_space<vmem>>, vector<8x1xi32>,
      %c0_15 = arith.constant 0 : index
      %c0_16 = arith.constant 0 : index
      %28 = vector.load %arg5[%c0_15, %c0_16] : memref<8x1xf32, #tpu.memory_space<vmem>>, vector<8x1xf32>
      %29 = arith.maximumf %28, %5 : vector<8x1xf32>
      %c0_17 = arith.constant 0 : index
      %c0_18 = arith.constant 0 : index
      %30 = vector.load %arg5[%c0_17, %c0_18] : memref<8x1xf32, #tpu.memory_space<vmem>>, vector<8x1xf32>
      tpu.vector_store %arg5[%c0_17, %c0_18], %29 {strides = array<i32>} : memref<8x1xf32, #tpu.memory_space<vmem>>, vector<8x1xf32>,
    } else {
    }
    %c0_i32_7 = arith.constant 0 : i32
    %20 = arith.cmpi eq, %arg2, %c0_i32_7 : i32
    %21 = arith.extui %20 : i1 to i32
    %c0_i32_8 = arith.constant 0 : i32
    %22 = arith.cmpi ne, %21, %c0_i32_8 : i32
    scf.if %22 {
      %c0_9 = arith.constant 0 : index
      %c0_10 = arith.constant 0 : index
      %23 = vector.load %arg6[%c0_9, %c0_10] : memref<8x1xi32, #tpu.memory_space<vmem>>, vector<8x1xi32>
      %c0_11 = arith.constant 0 : index
      %c0_12 = arith.constant 0 : index
      %c0_13 = arith.constant 0 : index
      %24 = vector.load %arg4[%c0_11, %c0_12, %c0_13] : memref<1x8x1xi32, #tpu.memory_space<vmem>>, vector<1x8x1xi32>
      %25 = vector.shape_cast %24 : vector<1x8x1xi32> to vector<8x1xi32>
      %26 = vector.shape_cast %23 : vector<8x1xi32> to vector<1x8x1xi32>
      tpu.vector_store %arg4[%c0_11, %c0_12, %c0_13], %26 {strides = array<i32>} : memref<1x8x1xi32, #tpu.memory_space<vmem>>, vector<1x8x1xi32>,
    } else {
    }
    return
  }
  func.func @transform_0(%arg0: i32, %arg1: i32, %arg2: i32) -> (i32, i32, i32) {
    %c0_i32 = arith.constant 0 : i32
    return %arg0, %arg1, %arg2 : i32, i32, i32
  }
  func.func @transform_1(%arg0: i32, %arg1: i32, %arg2: i32) -> (i32, i32, i32) {
    %c0_i32 = arith.constant 0 : i32
    %c0_i32_0 = arith.constant 0 : i32
    return %arg0, %arg1, %c0_i32 : i32, i32, i32
  }
}

</mosaic_0001>

<llo_original>
// kernel: tpu_custom_call.1
$region0: #{tpu_custom_call.1}
  #allocation0 [shape = 'u32[]', space=smem, size = 0x4, offset = 0x4, fixed_abs, tag = 'smem constant byte address 0x4 - core index']
  #allocation1 [shape = 'u32[144,128]{1,0:T(1,128)}', space=vmem, size = 0x12000, scoped, tag = 'internal scratch']
  #allocation2 [shape = 'f32[8,1]{1,0:T(8,128)}', space=vmem, size = 0x1000, scoped, tag = 'scratch operand']
  #allocation3 [shape = 's32[8,1]{1,0:T(8,128)}', space=vmem, size = 0x1000, scoped, tag = 'scratch operand']
  %s0 = inlined_call_operand.hbm [shape: f32[2,8,32], index: 0, kind: input, shape index: {}]
  %s1 = inlined_call_operand.vmem [shape: s32[2,8,1], index: 1, kind: output, shape index: {}]
  %s2 = sld [smem:[#allocation0]]
  $region53: #{tpu_custom_call.1} parent=0
    _
  %s4 = ssub.s32 1, %s2
  %s5 = scalar_select 0, %s4, %s2
  $region1: #{tpu_custom_call.1} parent=0
    #allocation4 [shape = 'u8[8192]{0}', space=vmem, size = 0x2000, scoped, tag = 'input window, operand 0']
    #allocation5 [shape = 's32[2]{0}', space=sflag, size = 0x8, scoped, tag = 'scoped memory for tpu_custom_call.1']
    %6 = vsyncpa [#allocation5], 0
    %s7 = scalar_lea.sflag [#allocation5], 1
    %8 = vsyncpa %s7, 0
    loop: start=0, step=1, limit=4
    $region2: #{tpu_custom_call.1} parent=1 // loop_pre_header
      _
    $region3: #{tpu_custom_call.1} parent=1 // loop_header
      %s10 = sphi 0, %s14
      %p11 = scmp.ge.s32.totalorder %s10, 4
      %s17 = sphi 0, %s36
      %s18 = sphi 0, %s32
      %s19 = sphi 0, %s28
      %s20 = sphi 0, %s17
      %s21 = sphi 0, %s18
      %s22 = sphi 0, %s19
      %s23 = sphi 0, %s20
      %s24 = sphi 0, %s21
      %s25 = sphi 0, %s22
      %s43 = sphi 0, %s45
      %s46 = sphi 0, %s43
      %s47 = sphi 0, %s46
      %s63 = sphi 0, %s47
      %s71 = sphi 0, %s73
      %s74 = sphi 0, %s71
      %s75 = sphi 0, %s74
      %s91 = sphi 0, %s75
    $region4: #{tpu_custom_call.1} parent=1 // loop_header_branch
      %13 = sbr.rel (%p11) target = $region8
    $region5: #{tpu_custom_call.1} parent=1 // loop_body
      %s15 = ssub.s32 %s10, 1
      %s16 = ssub.s32 %s10, 2
      %s26 = sadd.s32 1, %s19
      %p27 = scmp.ge.s32.totalorder %s26, 1
      %s28 = scalar_select %p27, 0, %s26
      %s29 = sadd.s32 1, %s18
      %s30 = scalar_select %p27, %s29, %s18
      %p31 = scmp.ge.s32.totalorder %s30, 1
      %s32 = scalar_select %p31, 0, %s30
      %s33 = sadd.s32 1, %s17
      %s34 = scalar_select %p31, %s33, %s17
      %p35 = scmp.ge.s32.totalorder %s34, 2
      %s36 = scalar_select %p35, 0, %s34
      %s37 = ssub.s32 %s17, %s36
      %s38 = ssub.s32 %s18, %s32
      %s39 = sor.u32 %s37, %s38
      %s40 = ssub.s32 %s19, %s28
      %s41 = sor.u32 %s39, %s40
      %p42 = scmp.eq.s32.totalorder %s41, 0
      %s44 = sadd.s32 %s43, 1
      %s45 = scalar_select %p42, %s43, %s44
      %p48 = pneg %p42
      %p49 = scmp.eq.s32.totalorder %s10, 1
      %p50 = por %p48, %p49
      %p51 = scmp.ne.s32.totalorder %s43, %s46
      %p52 = scmp.eq.s32.totalorder %s10, 0
      %p53 = por %p51, %p52
      %p54 = scmp.ne.s32.totalorder %s43, %s46
      %p55 = scmp.eq.s32.totalorder %s15, 1
      %p56 = por %p54, %p55
      %p57 = scmp.ne.s32.totalorder %s46, %s47
      %p58 = scmp.eq.s32.totalorder %s15, 0
      %p59 = por %p57, %p58
      %p60 = scmp.ne.s32.totalorder %s46, %s47
      %p61 = scmp.eq.s32.totalorder %s16, 1
      %p62 = por %p60, %p61
      %p64 = scmp.ne.s32.totalorder %s47, %s63
      %p65 = scmp.eq.s32.totalorder %s16, 0
      %p66 = por %p64, %p65
      %s67 = ssub.s32 %s17, %s36
      %s68 = ssub.s32 %s18, %s32
      %s69 = sor.u32 %s67, %s68
      %p70 = scmp.eq.s32.totalorder %s69, 0
      %s72 = sadd.s32 %s71, 1
      %s73 = scalar_select %p70, %s71, %s72
      %p76 = pneg %p70
      %p77 = scmp.eq.s32.totalorder %s10, 1
      %p78 = por %p76, %p77
      %p79 = scmp.ne.s32.totalorder %s71, %s74
      %p80 = scmp.eq.s32.totalorder %s10, 0
      %p81 = por %p79, %p80
      %p82 = scmp.ne.s32.totalorder %s71, %s74
      %p83 = scmp.eq.s32.totalorder %s15, 1
      %p84 = por %p82, %p83
      %p85 = scmp.ne.s32.totalorder %s74, %s75
      %p86 = scmp.eq.s32.totalorder %s15, 0
      %p87 = por %p85, %p86
      %p88 = scmp.ne.s32.totalorder %s74, %s75
      %p89 = scmp.eq.s32.totalorder %s16, 1
      %p90 = por %p88, %p89
      %p92 = scmp.ne.s32.totalorder %s75, %s91
      %p93 = scmp.eq.s32.totalorder %s16, 0
      %p94 = por %p92, %p93
      %p95 = scmp.le.s32.totalorder 1, %s10
      %p96 = scmp.lt.s32.totalorder %s10, 3
      %p97 = pnand %p95, %p96
      %p98 = pneg %p97
      // Predicated region
      $region9: #{tpu_custom_call.1} parent=5 // pred_check
        _
      $region10: #{tpu_custom_call.1} parent=5 // pred_check_branch
        %100 = sbr.rel (%p97) target = $region12
      $region11: #{tpu_custom_call.1} parent=5 // pred_region
        %s101 = ssub.s32 %s10, 1
      $region12: #{tpu_custom_call.1} parent=5 // pred_fallthru
        _
      %p102 = scmp.lt.s32.totalorder %s10, 2
      // Predicated region
      $region13: #{tpu_custom_call.1} parent=5 // pred_check
        %p103 = pneg %p102
      $region14: #{tpu_custom_call.1} parent=5 // pred_check_branch
        %105 = sbr.rel (%p103) target = $region16
      $region15: #{tpu_custom_call.1} parent=5 // pred_region
        // Predicated region
        $region17: #{tpu_custom_call.1} parent=15 // pred_check
          %p106 = pneg %p53
        $region18: #{tpu_custom_call.1} parent=15 // pred_check_branch
          %108 = sbr.rel (%p106) target = $region20
        $region19: #{tpu_custom_call.1} parent=15 // pred_region
          %s109 = sand.u32 %s43, 1
          %s110 = scalar_lea.sflag [#allocation5], %s109
          %s111 = sand.u32 %s43, 1
          %s112 = smul.addr %s111, 8
          %s113 = scalar_lea.vmem [#allocation4], %s112
          %s115 = ssub.s32 128, 128
          %116 = vsyncadd %s110, %s115
          %s117 = sadd.s32 %s19, %s18
          %s118 = sadd.s32 %s117, %s17
          %s119 = smul.addr %s118, 128
          %s120 = scalar_lea.hbm %s0, %s119
          %s122 = sshll.u32 %s113, 4
          %s123 = int_to_ptr.vmem [resolvable:$true] %s122
          %125 = dma.hbm_to_vmem [thread:$0]  %s120, 128, %s123, %s110
        $region20: #{tpu_custom_call.1} parent=15 // pred_fallthru
          _
      $region16: #{tpu_custom_call.1} parent=5 // pred_fallthru
        _
      %p126 = scmp.le.s32.totalorder 1, %s10
      %p127 = scmp.lt.s32.totalorder %s10, 3
      %p128 = pnand %p126, %p127
      %p129 = pneg %p128
      // Predicated region
      $region21: #{tpu_custom_call.1} parent=5 // pred_check
        _
      $region22: #{tpu_custom_call.1} parent=5 // pred_check_branch
        %131 = sbr.rel (%p128) target = $region24
      $region23: #{tpu_custom_call.1} parent=5 // pred_region
        %s132 = ssub.s32 %s10, 1
        %s133 = sand.u32 %s46, 1
        %s134 = scalar_lea.sflag [#allocation5], %s133
        %s135 = sand.u32 %s46, 1
        %s136 = smul.addr %s135, 8
        %s137 = scalar_lea.vmem [#allocation4], %s136
        // Predicated region
        $region25: #{tpu_custom_call.1} parent=23 // pred_check
          %p138 = pneg %p59
        $region26: #{tpu_custom_call.1} parent=23 // pred_check_branch
          %140 = sbr.rel (%p138) target = $region28
        $region27: #{tpu_custom_call.1} parent=23 // pred_region
          %141 = dma.done %s134, 128
        $region28: #{tpu_custom_call.1} parent=23 // pred_fallthru
          _
        %s142 = sand.u32 %s46, 1
        %s143 = scalar_lea.sflag [#allocation5], %s142
        %s144 = sand.u32 %s46, 1
        %s145 = smul.addr %s144, 8
        %s146 = scalar_lea.vmem [#allocation4], %s145
        %p147 = pneg %p59
        %p148 = pneg %p56
        %p149 = pneg %p87
        %p150 = pneg %p84
        %p151 = scmp.lt.s32.totalorder %s20, 1
        %s152 = scalar_select %p151, %s20, 1
        %p153 = scmp.lt.s32.totalorder %s21, 0
        %s154 = scalar_select %p153, %s21, 0
        %s155 = sadd.s32 %s154, %s152
        %s156 = smul.addr %s155, 8
        %s157 = scalar_lea.vmem %s1, %s156
        %p158 = scmp.lt.s32.totalorder %s20, 1
        %s159 = scalar_select %p158, %s20, 1
        %p160 = scmp.lt.s32.totalorder %s21, 0
        %s161 = scalar_select %p160, %s21, 0
        %s162 = sadd.s32 %s161, %s159
        %s163 = smul.addr %s162, 8
        %s164 = scalar_lea.vmem %s1, %s163
        %v165 = vld [vmem:[%s137] sm:$0xff]
        %s166 = smul.u32 %s22, 32
        %v167 = vlaneseq
        %v168 = vand.u32 %v167, 127
        %vm169 = vcmask 261120
        %v170 = vsel %vm169, %v165, -inf
        %171 = vmax.xlane.f32.xlu0 %v170
        %v172 = vpop.xlane.xlu0 %171
        %vm173 = vcmp.eq.f32.partialorder %v165, %v172
        %v174 = vsel %vm173, %v168, 32
        %v175 = vsel %vm169, %v174, 2147483647
        %v176 = vand.u32 %v175, 65535
        %v177 = vshra.s32 %v175, 16
        %v178 = vcvt.s32.f32 %v176
        %v179 = vcvt.s32.f32 %v177
        %180 = vmin.xlane.f32.xlu0 %v179
        %v181 = vpop.xlane.xlu0 %180
        %vm182 = vcmp.eq.f32.partialorder %v179, %v181
        %v183 = vsel %vm182, %v178, inf
        %184 = vmin.xlane.f32.xlu0 %v183
        %v185 = vpop.xlane.xlu0 %184
        %v186 = vcvt.f32.s32 %v185
        %v187 = vcvt.f32.s32 %v181
        %v188 = vshll.u32 %v187, 16
        %v189 = vadd.s32 %v188, %v186
        %v190 = vstv %s166
        %v191 = vadd.s32 %v190, %v189
        %p192 = scmp.eq.s32.totalorder %s22, 0
        // Predicated region
        $region29: #{tpu_custom_call.1} parent=23 // pred_check
          %p193 = pneg %p192
        $region30: #{tpu_custom_call.1} parent=23 // pred_check_branch
          %195 = sbr.rel (%p193) target = $region32
        $region31: #{tpu_custom_call.1} parent=23 // pred_region
          %vm196 = vcmask 7168
          %197 = vst.msk [vmem:[#allocation2] sm:$0xff] %vm196, %v172
          %198 = vst.msk [vmem:[#allocation3] sm:$0xff] %vm196, %v191
        $region32: #{tpu_custom_call.1} parent=23 // pred_fallthru
          _
        %p199 = scmp.gt.s32.totalorder %s22, 0
        // Predicated region
        $region33: #{tpu_custom_call.1} parent=23 // pred_check
          %p200 = pneg %p199
        $region34: #{tpu_custom_call.1} parent=23 // pred_check_branch
          %202 = sbr.rel (%p200) target = $region36
        $region35: #{tpu_custom_call.1} parent=23 // pred_region
          %v203 = vld [vmem:[#allocation2] sm:$0xff]
          %vm204 = vcmp.gt.f32.partialorder %v172, %v203
          %v205 = vld [vmem:[#allocation3] sm:$0xff]
          %v206 = vsel %vm204, %v191, %v205
          %vm207 = vcmask 7168
          %208 = vst.msk [vmem:[#allocation3] sm:$0xff] %vm207, %v206
          %v209 = vld [vmem:[#allocation2] sm:$0xff]
          %v210 = vmax.f32 %v209, %v172
          %211 = vst.msk [vmem:[#allocation2] sm:$0xff] %vm207, %v210
        $region36: #{tpu_custom_call.1} parent=23 // pred_fallthru
          _
        // Predicated region
        $region37: #{tpu_custom_call.1} parent=23 // pred_check
          %p212 = pneg %p192
        $region38: #{tpu_custom_call.1} parent=23 // pred_check_branch
          %214 = sbr.rel (%p212) target = $region40
        $region39: #{tpu_custom_call.1} parent=23 // pred_region
          %v215 = vld [vmem:[#allocation3] sm:$0xff]
          %vm216 = vcmask 7168
          %217 = vst.msk [vmem:[%s164] sm:$0xff] %vm216, %v215
        $region40: #{tpu_custom_call.1} parent=23 // pred_fallthru
          _
        %p218 = scmp.lt.s32.totalorder %s20, 1
        %s219 = scalar_select %p218, %s20, 1
        %p220 = scmp.lt.s32.totalorder %s21, 0
        %s221 = scalar_select %p220, %s21, 0
        %s222 = sadd.s32 %s221, %s219
        %s223 = smul.addr %s222, 8
        %s224 = scalar_lea.vmem %s1, %s223
        // Predicated region
        $region41: #{tpu_custom_call.1} parent=23 // pred_check
          %p225 = pneg %p84
        $region42: #{tpu_custom_call.1} parent=23 // pred_check_branch
          %227 = sbr.rel (%p225) target = $region44
        $region43: #{tpu_custom_call.1} parent=23 // pred_region
          _
        $region44: #{tpu_custom_call.1} parent=23 // pred_fallthru
          _
      $region24: #{tpu_custom_call.1} parent=5 // pred_fallthru
        _
      %p228 = scmp.le.s32.totalorder 2, %s10
      // Predicated region
      $region45: #{tpu_custom_call.1} parent=5 // pred_check
        %p229 = pneg %p228
      $region46: #{tpu_custom_call.1} parent=5 // pred_check_branch
        %231 = sbr.rel (%p229) target = $region48
      $region47: #{tpu_custom_call.1} parent=5 // pred_region
        %s232 = ssub.s32 %s10, 2
        // Predicated region
        $region49: #{tpu_custom_call.1} parent=47 // pred_check
          %p233 = pneg %p90
        $region50: #{tpu_custom_call.1} parent=47 // pred_check_branch
          %235 = sbr.rel (%p233) target = $region52
        $region51: #{tpu_custom_call.1} parent=47 // pred_region
          %p236 = scmp.lt.s32.totalorder %s23, 1
          %s237 = scalar_select %p236, %s23, 1
          %p238 = scmp.lt.s32.totalorder %s24, 0
          %s239 = scalar_select %p238, %s24, 0
          %s240 = sadd.s32 %s239, %s237
          %s241 = smul.addr %s240, 8
          %s242 = scalar_lea.vmem %s1, %s241
        $region52: #{tpu_custom_call.1} parent=47 // pred_fallthru
          _
      $region48: #{tpu_custom_call.1} parent=5 // pred_fallthru
        _
    $region6: #{tpu_custom_call.1} parent=1 // loop_footer
      %s14 = sadd.s32 1, %s10
    $region7: #{tpu_custom_call.1} parent=1 // loop_footer_branch
      %9 = sbr.rel target = $region3
    $region8: #{tpu_custom_call.1} parent=1 // loop_exit
      _
    %243 = vsyncpa [#allocation5], 1
    %s244 = scalar_lea.sflag [#allocation5], 1
    %245 = vsyncpa %s244, 1

</llo_original>
